<compile_context>
chip_gen: v5e
topology: v5e:2x2
jax: 0.10.0
libtpu: 0.0.40
codegen_flags: <defaults>
</compile_context>

<pallas_src>
import jax
import jax.numpy as jnp
from jax.experimental import pallas as pl
from jax.experimental.pallas import tpu as pltpu


def _self_attn_kernel(x_ref, w_ref, b_ref, o_ref):
    """One grid step = full-length self-attention for one batch element.

    x_ref : (L, C)   input (channels on the lane axis)
    w_ref : (C, 3C)  fused [Wq^T / sqrt(C) | Wk^T | Wv^T]
    b_ref : (1, 3C)  fused [bq / sqrt(C)   | bk   | bv  ]
    o_ref : (L, C)   output = x + attended
    """
    L, C = x_ref.shape
    x = x_ref[...]                                               # (L, C) f32

    # Fused QKV projection: one (L, C) @ (C, 3C) MXU matmul + VPU bias add.
    qkv = jnp.dot(x, w_ref[...],
                  preferred_element_type=jnp.float32) + b_ref[...]
    q = qkv[:, 0 * C:1 * C]          # already carries the 1/sqrt(C) scale
    k = qkv[:, 1 * C:2 * C]
    v = qkv[:, 2 * C:3 * C]

    # scores[i, j] = sum_c q[i, c] * k[j, c]  (contract last dims; no K^T copy)
    scores = jax.lax.dot_general(
        q, k, dimension_numbers=(((1,), (1,)), ((), ())),
        preferred_element_type=jnp.float32)                      # (L, L)

    # Numerically stable softmax with deferred normalization: scale the (L, C)
    # accumulator by 1/rowsum instead of normalizing the (L, L) matrix.
    m = jnp.max(scores, axis=-1, keepdims=True)
    e = jnp.exp(scores - m)                                      # (L, L)
    denom = jnp.sum(e, axis=-1, keepdims=True)                   # (L, 1)
    acc = jnp.dot(e, v, preferred_element_type=jnp.float32)      # (L, C)
    o_ref[...] = x + acc * pl.reciprocal(denom)                  # exact 1/rowsum


def self_attention_1d(x_ncl, wq, bq, wk, bk, wv, bv):
    """x_ncl: (B, C, L) float; Conv1d(k=1) weights (C, C); biases (C,).
    Returns (B, C, L), matching SelfAttention1D.forward."""
    B, C, L = x_ncl.shape
    f32 = jnp.float32

    # NCL -> NLC so channels map to the 128-lane axis.
    x_nlc = jnp.transpose(x_ncl, (0, 2, 1)).astype(f32)

    # Host-side (grid-invariant, done once):
    #  * fold the 1/sqrt(C) attention scale into the q projection,
    #  * pre-transpose (Conv1d k=1 is y = x @ W^T + b) and fuse Q|K|V.
    inv_scale = 1.0 / jnp.sqrt(f32(C))
    w_fused = jnp.concatenate(
        [wq.T.astype(f32) * inv_scale, wk.T.astype(f32), wv.T.astype(f32)],
        axis=1)                                                  # (C, 3C)
    b_fused = jnp.concatenate(
        [bq.astype(f32) * inv_scale, bk.astype(f32), bv.astype(f32)]
    ).reshape(1, 3 * C)                                          # (1, 3C)

    cost = pl.CostEstimate(
        flops=B * (6 * L * C * C + 4 * L * L * C),
        transcendentals=B * L * L,
        bytes_accessed=2 * B * L * C * 4 + 3 * C * C * 4 + 3 * C * 4,
    )

    out_nlc = pl.pallas_call(
        _self_attn_kernel,
        out_shape=jax.ShapeDtypeStruct((B, L, C), f32),
        grid_spec=pltpu.PrefetchScalarGridSpec(
            num_scalar_prefetch=0,
            grid=(B,),
            in_specs=[
                pl.BlockSpec((None, L, C), lambda b: (b, 0, 0)),  # x (batch squeezed)
                pl.BlockSpec((C, 3 * C), lambda b: (0, 0)),       # fused W
                pl.BlockSpec((1, 3 * C), lambda b: (0, 0)),       # fused bias
            ],
            out_specs=pl.BlockSpec((None, L, C), lambda b: (b, 0, 0)),
        ),
        compiler_params=pltpu.CompilerParams(
            dimension_semantics=("parallel",),
            vmem_limit_bytes=32 * 1024 * 1024,
        ),
        cost_estimate=cost,
    )(x_nlc, w_fused, b_fused)

    return jnp.transpose(out_nlc, (0, 2, 1))                     # back to (B, C, L)


def _reference(x, wq, bq, wk, bk, wv, bv):
    # Plain-JAX reference matching the PyTorch forward exactly.
    C = x.shape[1]
    conv = lambda w, b: jnp.einsum('oi,bil->bol', w, x) + b[None, :, None]
    q, k, v = conv(wq, bq), conv(wk, bk), conv(wv, bv)
    scores = jnp.einsum('bcl,bcm->blm', q, k) / jnp.sqrt(jnp.float32(C))
    attn = jax.nn.softmax(scores, axis=-1)
    attended = jnp.einsum('blm,bcm->bcl', attn, v)
    return x + attended


if __name__ == "__main__":
    B, C, L = 2, 4, 16
    key = jax.random.PRNGKey(0)
    ks = jax.random.split(key, 7)
    x = jax.random.normal(ks[0], (B, C, L), jnp.float32)
    # Conv1d(in=C, out=C, k=1) params -> weight (C, C), bias (C,)
    wq = jax.random.normal(ks[1], (C, C), jnp.float32) * 0.1
    bq = jax.random.normal(ks[2], (C,), jnp.float32) * 0.1
    wk = jax.random.normal(ks[3], (C, C), jnp.float32) * 0.1
    bk = jax.random.normal(ks[4], (C,), jnp.float32) * 0.1
    wv = jax.random.normal(ks[5], (C, C), jnp.float32) * 0.1
    bv = jax.random.normal(ks[6], (C,), jnp.float32) * 0.1

    out = self_attention_1d(x, wq, bq, wk, bk, wv, bv)
    jax.block_until_ready(out)

    ref = _reference(x, wq, bq, wk, bk, wv, bv)
    assert out.shape == (B, C, L)
    assert jnp.allclose(out, ref, atol=1e-4, rtol=1e-4), "mismatch vs reference"
    print("KERNEL_OK")
</pallas_src>

<mosaic_0001>
module attributes {stable_mosaic.version = 11 : i64} {
  func.func @_self_attn_kernel(%arg0: i32, %arg1: memref<1x16x4xf32, #tpu.memory_space<vmem>>, %arg2: memref<4x12xf32, #tpu.memory_space<vmem>>, %arg3: memref<1x12xf32, #tpu.memory_space<vmem>>, %arg4: memref<1x16x4xf32, #tpu.memory_space<vmem>>) attributes {dimension_semantics = [#tpu.dimension_semantics<parallel>], iteration_bounds = array<i64: 2>, scalar_prefetch = 0 : i64, scratch_operands = 0 : i64, tpu.core_type = #tpu.core_type<tc>, window_params = [{transform_indices = @transform_0, window_bounds = array<i64: 1, 16, 4>}, {pipeline_mode = #tpu.pipeline_mode<synchronous>, transform_indices = @transform_1, window_bounds = array<i64: 4, 12>}, {pipeline_mode = #tpu.pipeline_mode<synchronous>, transform_indices = @transform_2, window_bounds = array<i64: 1, 12>}, {transform_indices = @transform_3, window_bounds = array<i64: 1, 16, 4>}]} {
    %c0 = arith.constant 0 : index
    %c0_0 = arith.constant 0 : index
    %c0_1 = arith.constant 0 : index
    %0 = vector.load %arg1[%c0, %c0_0, %c0_1] : memref<1x16x4xf32, #tpu.memory_space<vmem>>, vector<1x16x4xf32>
    %1 = vector.shape_cast %0 : vector<1x16x4xf32> to vector<16x4xf32>
    %c0_2 = arith.constant 0 : index
    %c0_3 = arith.constant 0 : index
    %2 = vector.load %arg2[%c0_2, %c0_3] : memref<4x12xf32, #tpu.memory_space<vmem>>, vector<4x12xf32>
    %cst = arith.constant dense<0.000000e+00> : vector<16x12xf32>
    %3 = tpu.matmul %1, %2, %cst {dimension_numbers = #tpu.dot_dimension_numbers<[1], [0], [0], [1], [0, 0, 1, 1], [], []>} : vector<16x4xf32>, vector<4x12xf32>, vector<16x12xf32> -> vector<16x12xf32>
    %c0_4 = arith.constant 0 : index
    %c0_5 = arith.constant 0 : index
    %4 = vector.load %arg3[%c0_4, %c0_5] : memref<1x12xf32, #tpu.memory_space<vmem>>, vector<1x12xf32>
    %5 = vector.broadcast %4 : vector<1x12xf32> to vector<16x12xf32>
    %6 = arith.addf %3, %5 : vector<16x12xf32>
    %7 = vector.extract_strided_slice %6 {offsets = [0, 0], sizes = [16, 4], strides = [1, 1]} : vector<16x12xf32> to vector<16x4xf32>
    %8 = vector.extract_strided_slice %6 {offsets = [0, 4], sizes = [16, 4], strides = [1, 1]} : vector<16x12xf32> to vector<16x4xf32>
    %9 = vector.extract_strided_slice %6 {offsets = [0, 8], sizes = [16, 4], strides = [1, 1]} : vector<16x12xf32> to vector<16x4xf32>
    %cst_6 = arith.constant dense<0.000000e+00> : vector<16x16xf32>
    %10 = tpu.matmul %7, %8, %cst_6 {dimension_numbers = #tpu.dot_dimension_numbers<[1], [1], [0], [0], [0, 0, 1, 0], [], []>} : vector<16x4xf32>, vector<16x4xf32>, vector<16x16xf32> -> vector<16x16xf32>
    %cst_7 = arith.constant dense<0xFF800000> : vector<16xf32>
    %11 = vector.multi_reduction <maximumf>, %10, %cst_7 [1] : vector<16x16xf32> to vector<16xf32>
    %12 = vector.shape_cast %11 : vector<16xf32> to vector<16x1xf32>
    %13 = vector.broadcast %12 : vector<16x1xf32> to vector<16x16xf32>
    %14 = arith.subf %10, %13 : vector<16x16xf32>
    %15 = math.exp %14 : vector<16x16xf32>
    %cst_8 = arith.constant dense<0.000000e+00> : vector<16xf32>
    %16 = vector.multi_reduction <add>, %15, %cst_8 [1] : vector<16x16xf32> to vector<16xf32>
    %17 = vector.shape_cast %16 : vector<16xf32> to vector<16x1xf32>
    %cst_9 = arith.constant dense<0.000000e+00> : vector<16x4xf32>
    %18 = tpu.matmul %15, %9, %cst_9 {dimension_numbers = #tpu.dot_dimension_numbers<[1], [0], [0], [1], [0, 0, 1, 1], [], []>} : vector<16x16xf32>, vector<16x4xf32>, vector<16x4xf32> -> vector<16x4xf32>
    %19 = tpu.reciprocal %17 : vector<16x1xf32> -> vector<16x1xf32>
    %20 = vector.broadcast %19 : vector<16x1xf32> to vector<16x4xf32>
    %21 = arith.mulf %18, %20 : vector<16x4xf32>
    %22 = arith.addf %1, %21 : vector<16x4xf32>
    %c0_10 = arith.constant 0 : index
    %c0_11 = arith.constant 0 : index
    %c0_12 = arith.constant 0 : index
    %23 = vector.load %arg4[%c0_10, %c0_11, %c0_12] : memref<1x16x4xf32, #tpu.memory_space<vmem>>, vector<1x16x4xf32>
    %24 = vector.shape_cast %23 : vector<1x16x4xf32> to vector<16x4xf32>
    %25 = vector.shape_cast %22 : vector<16x4xf32> to vector<1x16x4xf32>
    tpu.vector_store %arg4[%c0_10, %c0_11, %c0_12], %25 {strides = array<i32>} : memref<1x16x4xf32, #tpu.memory_space<vmem>>, vector<1x16x4xf32>,
    return
  }
  func.func @transform_0(%arg0: i32) -> (i32, i32, i32) {
    %c0_i32 = arith.constant 0 : i32
    %c0_i32_0 = arith.constant 0 : i32
    %c0_i32_1 = arith.constant 0 : i32
    return %arg0, %c0_i32, %c0_i32_0 : i32, i32, i32
  }
  func.func @transform_1(%arg0: i32) -> (i32, i32) {
    %c0_i32 = arith.constant 0 : i32
    %c0_i32_0 = arith.constant 0 : i32
    %c0_i32_1 = arith.constant 0 : i32
    return %c0_i32, %c0_i32_0 : i32, i32
  }
  func.func @transform_2(%arg0: i32) -> (i32, i32) {
    %c0_i32 = arith.constant 0 : i32
    %c0_i32_0 = arith.constant 0 : i32
    %c0_i32_1 = arith.constant 0 : i32
    return %c0_i32, %c0_i32_0 : i32, i32
  }
  func.func @transform_3(%arg0: i32) -> (i32, i32, i32) {
    %c0_i32 = arith.constant 0 : i32
    %c0_i32_0 = arith.constant 0 : i32
    %c0_i32_1 = arith.constant 0 : i32
    return %arg0, %c0_i32, %c0_i32_0 : i32, i32, i32
  }
}

</mosaic_0001>

<llo_original>
// kernel: tpu_custom_call.1
$region0: #{tpu_custom_call.1}
  #allocation0 [shape = 'u32[]', space=smem, size = 0x4, offset = 0x4, fixed_abs, tag = 'smem constant byte address 0x4 - core index']
  #allocation1 [shape = 'u32[72,128]{1,0:T(1,128)}', space=vmem, size = 0x9000, scoped, tag = 'internal scratch']
  %s0 = inlined_call_operand.vmem [shape: f32[2,16,4], index: 0, kind: input, shape index: {}]
  %s1 = inlined_call_operand.vmem [shape: f32[4,12], index: 1, kind: input, shape index: {}]
  %s2 = inlined_call_operand.vmem [shape: f32[1,12], index: 2, kind: input, shape index: {}]
  %s3 = inlined_call_operand.vmem [shape: f32[2,16,4], index: 3, kind: output, shape index: {}]
  %s4 = sld [smem:[#allocation0]]
  $region45: #{tpu_custom_call.1} parent=0
    _
  %s6 = ssub.s32 1, %s4
  %s7 = scalar_select 0, %s6, %s4
  loop: start=0, step=1, limit=4
  $region2: #{tpu_custom_call.1} parent=0 // loop_pre_header
    _
  $region3: #{tpu_custom_call.1} parent=0 // loop_header
    %s9 = sphi 0, %s13
    %p10 = scmp.ge.s32.totalorder %s9, 4
    %s19 = sphi 0, %s21
    %s22 = sphi 0, %s19
    %s23 = sphi 0, %s22
    %s39 = sphi 0, %s23
    %s43 = sphi 0, %s43
    %s45 = sphi 0, %s43
    %s46 = sphi 0, %s45
    %s60 = sphi 0, %s46
    %s64 = sphi 0, %s64
    %s66 = sphi 0, %s64
    %s67 = sphi 0, %s66
    %s81 = sphi 0, %s67
    %s87 = sphi 0, %s89
    %s90 = sphi 0, %s87
    %s91 = sphi 0, %s90
    %s107 = sphi 0, %s91
  $region4: #{tpu_custom_call.1} parent=0 // loop_header_branch
    %12 = sbr.rel (%p10) target = $region8
  $region5: #{tpu_custom_call.1} parent=0 // loop_body
    %s14 = ssub.s32 %s9, 1
    %s15 = ssub.s32 %s9, 2
    %s16 = sadd.s32 %s9, 1
    %s17 = ssub.s32 %s9, %s16
    %p18 = scmp.eq.s32.totalorder %s17, 0
    %s20 = sadd.s32 %s19, 1
    %s21 = scalar_select %p18, %s19, %s20
    %p24 = pneg %p18
    %p25 = scmp.eq.s32.totalorder %s9, 1
    %p26 = por %p24, %p25
    %p27 = scmp.ne.s32.totalorder %s19, %s22
    %p28 = scmp.eq.s32.totalorder %s9, 0
    %p29 = por %p27, %p28
    %p30 = scmp.ne.s32.totalorder %s19, %s22
    %p31 = scmp.eq.s32.totalorder %s14, 1
    %p32 = por %p30, %p31
    %p33 = scmp.ne.s32.totalorder %s22, %s23
    %p34 = scmp.eq.s32.totalorder %s14, 0
    %p35 = por %p33, %p34
    %p36 = scmp.ne.s32.totalorder %s22, %s23
    %p37 = scmp.eq.s32.totalorder %s15, 1
    %p38 = por %p36, %p37
    %p40 = scmp.ne.s32.totalorder %s23, %s39
    %p41 = scmp.eq.s32.totalorder %s15, 0
    %p42 = por %p40, %p41
    %s44 = sadd.s32 %s43, 1
    %p47 = scmp.eq.s32.totalorder %s9, 1
    %p48 = scmp.ne.s32.totalorder %s43, %s45
    %p49 = scmp.eq.s32.totalorder %s9, 0
    %p50 = por %p48, %p49
    %p51 = scmp.ne.s32.totalorder %s43, %s45
    %p52 = scmp.eq.s32.totalorder %s14, 1
    %p53 = por %p51, %p52
    %p54 = scmp.ne.s32.totalorder %s45, %s46
    %p55 = scmp.eq.s32.totalorder %s14, 0
    %p56 = por %p54, %p55
    %p57 = scmp.ne.s32.totalorder %s45, %s46
    %p58 = scmp.eq.s32.totalorder %s15, 1
    %p59 = por %p57, %p58
    %p61 = scmp.ne.s32.totalorder %s46, %s60
    %p62 = scmp.eq.s32.totalorder %s15, 0
    %p63 = por %p61, %p62
    %s65 = sadd.s32 %s64, 1
    %p68 = scmp.eq.s32.totalorder %s9, 1
    %p69 = scmp.ne.s32.totalorder %s64, %s66
    %p70 = scmp.eq.s32.totalorder %s9, 0
    %p71 = por %p69, %p70
    %p72 = scmp.ne.s32.totalorder %s64, %s66
    %p73 = scmp.eq.s32.totalorder %s14, 1
    %p74 = por %p72, %p73
    %p75 = scmp.ne.s32.totalorder %s66, %s67
    %p76 = scmp.eq.s32.totalorder %s14, 0
    %p77 = por %p75, %p76
    %p78 = scmp.ne.s32.totalorder %s66, %s67
    %p79 = scmp.eq.s32.totalorder %s15, 1
    %p80 = por %p78, %p79
    %p82 = scmp.ne.s32.totalorder %s67, %s81
    %p83 = scmp.eq.s32.totalorder %s15, 0
    %p84 = por %p82, %p83
    %s85 = ssub.s32 %s9, %s16
    %p86 = scmp.eq.s32.totalorder %s85, 0
    %s88 = sadd.s32 %s87, 1
    %s89 = scalar_select %p86, %s87, %s88
    %p92 = pneg %p86
    %p93 = scmp.eq.s32.totalorder %s9, 1
    %p94 = por %p92, %p93
    %p95 = scmp.ne.s32.totalorder %s87, %s90
    %p96 = scmp.eq.s32.totalorder %s9, 0
    %p97 = por %p95, %p96
    %p98 = scmp.ne.s32.totalorder %s87, %s90
    %p99 = scmp.eq.s32.totalorder %s14, 1
    %p100 = por %p98, %p99
    %p101 = scmp.ne.s32.totalorder %s90, %s91
    %p102 = scmp.eq.s32.totalorder %s14, 0
    %p103 = por %p101, %p102
    %p104 = scmp.ne.s32.totalorder %s90, %s91
    %p105 = scmp.eq.s32.totalorder %s15, 1
    %p106 = por %p104, %p105
    %p108 = scmp.ne.s32.totalorder %s91, %s107
    %p109 = scmp.eq.s32.totalorder %s15, 0
    %p110 = por %p108, %p109
    %p111 = scmp.le.s32.totalorder 1, %s9
    %p112 = scmp.lt.s32.totalorder %s9, 3
    %p113 = pnand %p111, %p112
    %p114 = pneg %p113
    // Predicated region
    $region9: #{tpu_custom_call.1} parent=5 // pred_check
      _
    $region10: #{tpu_custom_call.1} parent=5 // pred_check_branch
      %116 = sbr.rel (%p113) target = $region12
    $region11: #{tpu_custom_call.1} parent=5 // pred_region
      %s117 = ssub.s32 %s9, 1
      // Predicated region
      $region13: #{tpu_custom_call.1} parent=11 // pred_check
        %p118 = pneg %p56
      $region14: #{tpu_custom_call.1} parent=11 // pred_check_branch
        %120 = sbr.rel (%p118) target = $region16
      $region15: #{tpu_custom_call.1} parent=11 // pred_region
        _
      $region16: #{tpu_custom_call.1} parent=11 // pred_fallthru
        _
      // Predicated region
      $region17: #{tpu_custom_call.1} parent=11 // pred_check
        %p121 = pneg %p77
      $region18: #{tpu_custom_call.1} parent=11 // pred_check_branch
        %123 = sbr.rel (%p121) target = $region20
      $region19: #{tpu_custom_call.1} parent=11 // pred_region
        _
      $region20: #{tpu_custom_call.1} parent=11 // pred_fallthru
        _
    $region12: #{tpu_custom_call.1} parent=5 // pred_fallthru
      _
    %p124 = scmp.lt.s32.totalorder %s9, 2
    // Predicated region
    $region21: #{tpu_custom_call.1} parent=5 // pred_check
      %p125 = pneg %p124
    $region22: #{tpu_custom_call.1} parent=5 // pred_check_branch
      %127 = sbr.rel (%p125) target = $region24
    $region23: #{tpu_custom_call.1} parent=5 // pred_region
      // Predicated region
      $region25: #{tpu_custom_call.1} parent=23 // pred_check
        %p128 = pneg %p29
      $region26: #{tpu_custom_call.1} parent=23 // pred_check_branch
        %130 = sbr.rel (%p128) target = $region28
      $region27: #{tpu_custom_call.1} parent=23 // pred_region
        %p131 = scmp.lt.s32.totalorder %s9, 1
        %s132 = scalar_select %p131, %s9, 1
        %s133 = smul.addr %s132, 2
        %s134 = smul.addr %s133, 8
        %s135 = scalar_lea.vmem %s0, %s134
      $region28: #{tpu_custom_call.1} parent=23 // pred_fallthru
        _
    $region24: #{tpu_custom_call.1} parent=5 // pred_fallthru
      _
    %p136 = scmp.le.s32.totalorder 1, %s9
    %p137 = scmp.lt.s32.totalorder %s9, 3
    %p138 = pnand %p136, %p137
    %p139 = pneg %p138
    // Predicated region
    $region29: #{tpu_custom_call.1} parent=5 // pred_check
      _
    $region30: #{tpu_custom_call.1} parent=5 // pred_check_branch
      %141 = sbr.rel (%p138) target = $region32
    $region31: #{tpu_custom_call.1} parent=5 // pred_region
      %s142 = ssub.s32 %s9, 1
      %p143 = scmp.lt.s32.totalorder %s14, 1
      %s144 = scalar_select %p143, %s14, 1
      %s145 = smul.addr %s144, 2
      %s146 = smul.addr %s145, 8
      %s147 = scalar_lea.vmem %s0, %s146
      %p148 = pneg %p35
      %p149 = pneg %p32
      %p150 = pneg %p56
      %p151 = pneg %p53
      %p152 = pneg %p77
      %p153 = pneg %p74
      %p154 = pneg %p103
      %p155 = pneg %p100
      %p156 = scmp.lt.s32.totalorder %s14, 1
      %s157 = scalar_select %p156, %s14, 1
      %s158 = smul.addr %s157, 2
      %s159 = smul.addr %s158, 8
      %s160 = scalar_lea.vmem %s3, %s159
      %p161 = scmp.lt.s32.totalorder %s14, 1
      %s162 = scalar_select %p161, %s14, 1
      %s163 = smul.addr %s162, 2
      %s164 = smul.addr %s163, 8
      %s165 = scalar_lea.vmem %s0, %s164
      %p166 = scmp.lt.s32.totalorder %s14, 1
      %s167 = scalar_select %p166, %s14, 1
      %s168 = smul.addr %s167, 2
      %s169 = smul.addr %s168, 8
      %s170 = scalar_lea.vmem %s3, %s169
      %v171 = vld [vmem:[%s165] sm:$0xff]
      %v172 = vld [vmem:[%s165 + $0x8] sm:$0xff]
      %v173 = vld [vmem:[%s1] sm:$0xf]
      %v174 = vld [vmem:[%s2] sm:$0x1]
      %v176 = vperm.slane %v174, 0
      %vm178 = vcmask 31744
      %v180 = vsel %vm178, %v171, 0
      %v183 = vsel %vm178, %v172, 0
      %vm185 = vcmask 1043456
      %v187 = vsel %vm185, %v173, 0
      %189 = vmatpush.msra.mxu0 0.0
      %190 = vmatpush.msra.mxu0 0.0
      %191 = vmatpush.msra.mxu0 0.0
      %192 = vmatpush.msra.mxu0 0.0
      %193 = vmatpush.msra.mxu0 0.0
      %194 = vmatpush.msra.mxu0 0.0
      %195 = vmatpush.msra.mxu0 0.0
      %196 = vmatpush.msra.mxu0 0.0
      %197 = vmatpush.msra.mxu0 0.0
      %198 = vmatpush.msra.mxu0 0.0
      %199 = vmatpush.msra.mxu0 0.0
      %200 = vmatpush.msra.mxu0 0.0
      %201 = vmatpush.msra.mxu0 0.0
      %202 = vmatpush.msra.mxu0 0.0
      %203 = vmatpush.msra.mxu0 0.0
      %204 = vmatpush.msra.mxu0 %v187
      %205 = vmatmul.f32.gmra.mxu0 %v180
      %v206 = vpop.f32.mrf.mxu0
      %v207 = vadd.f32 %v176, %v206
      %208 = vmatmul.f32.gmra.mxu0 %v183
      %v209 = vpop.f32.mrf.mxu0
      %v210 = vadd.f32 %v176, %v209
      %211 = vdwg.mxu0
      %214 = vrot.lane.b32.xlu0 %v207, 124
      %v215 = vpop.permute.xlu0 %214
      %216 = vrot.lane.b32.xlu0 %v210, 124
      %v217 = vpop.permute.xlu0 %216
      %v218 = vsel %vm178, %v207, 0
      %v220 = vsel %vm178, %v210, 0
      %v222 = vsel %vm178, %v215, 0
      %v224 = vsel %vm178, %v217, 0
      %226 = vmatpush.xpose.msra.mxu0 0.0
      %227 = vmatpush.xpose.msra.mxu0 0.0
      %228 = vmatpush.xpose.msra.mxu0 0.0
      %229 = vmatpush.xpose.msra.mxu0 0.0
      %230 = vmatpush.xpose.msra.mxu0 0.0
      %231 = vmatpush.xpose.msra.mxu0 0.0
      %232 = vmatpush.xpose.msra.mxu0 0.0
      %233 = vmatpush.xpose.msra.mxu0 0.0
      %234 = vmatpush.xpose.msra.mxu0 0.0
      %235 = vmatpush.xpose.msra.mxu0 0.0
      %236 = vmatpush.xpose.msra.mxu0 0.0
      %237 = vmatpush.xpose.msra.mxu0 0.0
      %238 = vmatpush.xpose.msra.mxu0 0.0
      %239 = vmatpush.xpose.msra.mxu0 0.0
      %240 = vmatpush.xpose.msra.mxu0 %v224
      %241 = vmatpush.xpose.msra.mxu0 %v222
      %242 = vmatmul.f32.gmra.mxu0 %v218
      %v243 = vpop.f32.mrf.mxu0
      %v244 = vadd.f32 0.0, %v243
      %245 = vmatmul.f32.gmra.mxu0 %v220
      %v246 = vpop.f32.mrf.mxu0
      %v247 = vadd.f32 0.0, %v246
      %248 = vdwg.mxu0
      %vm249 = vcmask 130048
      %v250 = vsel %vm249, %v244, -inf
      %251 = vmax.xlane.f32.xlu0 %v250
      %v252 = vpop.xlane.xlu0 %251
      %v253 = vsel %vm249, %v247, -inf
      %254 = vmax.xlane.f32.xlu0 %v253
      %v255 = vpop.xlane.xlu0 %254
      %v256 = vsub.f32 %v244, %v252
      %v257 = vsub.f32 %v247, %v255
      %v258 = vmul.f32 %v256, 1.442695
      %v259 = vpow.pop %v258
      %v260 = vmul.f32 %v257, 1.442695
      %v261 = vpow.pop %v260
      %v262 = vsel %vm249, %v259, 0.0
      %263 = vadd.xlane.f32.xlu0 %v262
      %v264 = vpop.xlane.xlu0 %263
      %v265 = vsel %vm249, %v261, 0.0
      %266 = vadd.xlane.f32.xlu0 %v265
      %v267 = vpop.xlane.xlu0 %266
      %268 = vrot.lane.b32.xlu0 %v207, 120
      %v269 = vpop.permute.xlu0 %268
      %270 = vrot.lane.b32.xlu0 %v210, 120
      %v271 = vpop.permute.xlu0 %270
      %v275 = vsel %vm249, %v259, 0
      %v278 = vsel %vm249, %v261, 0
      %280 = vmatpush.msra.mxu0 0.0
      %281 = vmatpush.msra.mxu0 0.0
      %282 = vmatpush.msra.mxu0 0.0
      %283 = vmatpush.msra.mxu0 0.0
      %284 = vmatpush.msra.mxu0 0.0
      %285 = vmatpush.msra.mxu0 0.0
      %286 = vmatpush.msra.mxu0 0.0
      %287 = vmatpush.msra.mxu0 0.0
      %288 = vmatpush.msra.mxu0 0.0
      %289 = vmatpush.msra.mxu0 0.0
      %290 = vmatpush.msra.mxu0 0.0
      %291 = vmatpush.msra.mxu0 0.0
      %292 = vmatpush.msra.mxu0 0.0
      %293 = vmatpush.msra.mxu0 0.0
      %294 = vmatpush.msra.mxu0 %v271
      %295 = vmatpush.msra.mxu0 %v269
      %296 = vmatmul.f32.gmra.mxu0 %v275
      %v297 = vpop.f32.mrf.mxu0
      %v298 = vadd.f32 0.0, %v297
      %299 = vmatmul.f32.gmra.mxu0 %v278
      %v300 = vpop.f32.mrf.mxu0
      %v301 = vadd.f32 0.0, %v300
      %302 = vdwg.mxu0
      %v303 = vrcp.pop %v264
      %v304 = vmul.f32 %v264, %v303
      %v305 = vsub.f32 1.0, %v304
      %v306 = vmul.f32 %v303, %v305
      %v307 = vadd.f32 %v303, %v306
      %vm308 = vweird.f32 %v264
      %vm309 = vweird.f32 %v303
      %vm310 = vmor %vm308, %vm309
      %v311 = vsel %vm310, %v303, %v307
      %v312 = vand.u32 2147483647, %v264
      %vm313 = vcmp.eq.f32.partialorder %v312, 8.507059e+37
      %v314 = vand.u32 %v264, 2147483648
      %v315 = vor.u32 1.1754944e-38, %v314
      %v316 = vsel %vm313, %v315, %v311
      %v317 = vrcp.pop %v267
      %v318 = vmul.f32 %v267, %v317
      %v319 = vsub.f32 1.0, %v318
      %v320 = vmul.f32 %v317, %v319
      %v321 = vadd.f32 %v317, %v320
      %vm322 = vweird.f32 %v267
      %vm323 = vweird.f32 %v317
      %vm324 = vmor %vm322, %vm323
      %v325 = vsel %vm324, %v317, %v321
      %v326 = vand.u32 2147483647, %v267
      %vm327 = vcmp.eq.f32.partialorder %v326, 8.507059e+37
      %v328 = vand.u32 %v267, 2147483648
      %v329 = vor.u32 1.1754944e-38, %v328
      %v330 = vsel %vm327, %v329, %v325
      %v331 = vmul.f32 %v298, %v316
      %v332 = vmul.f32 %v301, %v330
      %v333 = vadd.f32 %v171, %v331
      %v334 = vadd.f32 %v172, %v332
      %335 = vst.msk [vmem:[%s170] sm:$0xff] %vm178, %v333
      %336 = vst.msk [vmem:[%s170 + $0x8] sm:$0xff] %vm178, %v334
      %p337 = scmp.lt.s32.totalorder %s14, 1
      %s338 = scalar_select %p337, %s14, 1
      %s339 = smul.addr %s338, 2
      %s340 = smul.addr %s339, 8
      %s341 = scalar_lea.vmem %s3, %s340
      // Predicated region
      $region33: #{tpu_custom_call.1} parent=31 // pred_check
        %p342 = pneg %p100
      $region34: #{tpu_custom_call.1} parent=31 // pred_check_branch
        %344 = sbr.rel (%p342) target = $region36
      $region35: #{tpu_custom_call.1} parent=31 // pred_region
        _
      $region36: #{tpu_custom_call.1} parent=31 // pred_fallthru
        _
    $region32: #{tpu_custom_call.1} parent=5 // pred_fallthru
      _
    %p345 = scmp.le.s32.totalorder 2, %s9
    // Predicated region
    $region37: #{tpu_custom_call.1} parent=5 // pred_check
      %p346 = pneg %p345
    $region38: #{tpu_custom_call.1} parent=5 // pred_check_branch
      %348 = sbr.rel (%p346) target = $region40
    $region39: #{tpu_custom_call.1} parent=5 // pred_region
      %s349 = ssub.s32 %s9, 2
      // Predicated region
      $region41: #{tpu_custom_call.1} parent=39 // pred_check
        %p350 = pneg %p106
      $region42: #{tpu_custom_call.1} parent=39 // pred_check_branch
        %352 = sbr.rel (%p350) target = $region44
      $region43: #{tpu_custom_call.1} parent=39 // pred_region
        %p353 = scmp.lt.s32.totalorder %s15, 1
        %s354 = scalar_select %p353, %s15, 1
        %s355 = smul.addr %s354, 2
        %s356 = smul.addr %s355, 8
        %s357 = scalar_lea.vmem %s3, %s356
      $region44: #{tpu_custom_call.1} parent=39 // pred_fallthru
        _
    $region40: #{tpu_custom_call.1} parent=5 // pred_fallthru
      _
  $region6: #{tpu_custom_call.1} parent=0 // loop_footer
    %s13 = sadd.s32 1, %s9
  $region7: #{tpu_custom_call.1} parent=0 // loop_footer_branch
    %8 = sbr.rel target = $region3
  $region8: #{tpu_custom_call.1} parent=0 // loop_exit
    _

</llo_original>
